<compile_context>
chip_gen: v7x
topology: tpu7x:2x2x1
jax: 0.10.0
libtpu: 0.0.40
codegen_flags: <defaults>
</compile_context>

<pallas_src>
import jax
import jax.numpy as jnp
from jax.experimental import pallas as pl
from jax.experimental.pallas import tpu as pltpu


# ---------------------------------------------------------------------------
# Irreps "2x0e + 2x2e + 4e"  ->  list of (multiplicity, ir_dim, is_scalar)
# ---------------------------------------------------------------------------
IRREPS = ((2, 1, True), (2, 5, False), (1, 9, False))
IRREPS_DIM = sum(mul * d for mul, d, _ in IRREPS)  # 21

LANE = 128
SUBLANE = 8


def _round_up(x: int, m: int) -> int:
    return ((x + m - 1) // m) * m


# ---------------------------------------------------------------------------
# Glue: MeanNormNormalize.compute_statistics in plain JAX
#   (normalization='component', reduce='mean', eps=1e-5)
# ---------------------------------------------------------------------------
def compute_statistics(data: jnp.ndarray, eps: float = 1e-5):
    """data: [batch, D] -> (mean [D], norm [D])  (float32)."""
    all_mean = []
    all_norm = []
    ix = 0
    for mul, d, is_scalar in IRREPS:
        field = data[:, ix : ix + mul * d]
        ix += mul * d
        field = field.reshape(-1, mul, d)
        if is_scalar:
            field_mean = field.mean(axis=0).reshape(mul)              # [mul]
            field = field - field_mean.reshape(-1, mul, 1)
        else:
            field_mean = jnp.zeros((mul,), dtype=data.dtype)
        all_mean.append(jnp.repeat(field_mean, d))                    # [mul*d]

        field_norm = (field ** 2).mean(axis=-1)                       # component
        field_norm = field_norm.mean(axis=0)                          # reduce=mean
        field_norm = jnp.sqrt(field_norm + eps)                       # [mul]
        all_norm.append(jnp.repeat(field_norm, d))                    # [mul*d]

    assert ix == data.shape[-1]
    return jnp.concatenate(all_mean), jnp.concatenate(all_norm)


# ---------------------------------------------------------------------------
# Pallas kernels
#   fwd:  (x - mean) * inv         (inv = 1 / (norm*scale), precomputed)
#   inv:  x * mul + mean           (mul = norm*scale, precomputed)
# mean / scale-vector blocks are [1, Dp], broadcast over the batch sublanes.
# ---------------------------------------------------------------------------
def _normalize_fwd_kernel(x_ref, mean_ref, inv_ref, o_ref):
    o_ref[...] = (x_ref[...] - mean_ref[...]) * inv_ref[...]


def _normalize_inv_kernel(x_ref, mean_ref, mul_ref, o_ref):
    o_ref[...] = x_ref[...] * mul_ref[...] + mean_ref[...]


def _run_normalizer(kernel_body, data, mean_vec, scale_vec, batch_tile=None):
    """Run the elementwise normalization kernel on [B, D] data.

    Pads the feature dim to a lane-dense 128 multiple and the batch dim to a
    multiple of the batch tile; slices the result back to [B, D].
    """
    B, D = data.shape
    dtype = data.dtype
    Dp = _round_up(D, LANE)

    if batch_tile is None:
        # Largest useful tile, capped so VMEM double-buffering stays modest
        # (1024 x 128 x 4B ~= 0.5 MiB per buffer -> fine on v5e/v6e/v7x).
        batch_tile = min(1024, _round_up(max(B, 1), SUBLANE))
    batch_tile = _round_up(batch_tile, SUBLANE)
    B_pad = _round_up(B, batch_tile)

    # Lane-dense padding.  norm/inv lanes are padded with 1.0 (never 0) so no
    # Inf/NaN is generated in dead lanes; mean lanes padded with 0.
    x = jnp.pad(data, ((0, B_pad - B), (0, Dp - D)))
    mean2d = jnp.pad(mean_vec.astype(dtype).reshape(1, D), ((0, 0), (0, Dp - D)))
    scale2d = jnp.pad(
        scale_vec.astype(dtype).reshape(1, D), ((0, 0), (0, Dp - D)),
        constant_values=1.0,
    )

    grid = (B_pad // batch_tile,)
    out = pl.pallas_call(
        kernel_body,
        out_shape=jax.ShapeDtypeStruct((B_pad, Dp), dtype),
        grid_spec=pltpu.PrefetchScalarGridSpec(
            num_scalar_prefetch=0,
            grid=grid,
            in_specs=[
                pl.BlockSpec((batch_tile, Dp), lambda i: (i, 0)),
                pl.BlockSpec((1, Dp), lambda i: (0, 0)),
                pl.BlockSpec((1, Dp), lambda i: (0, 0)),
            ],
            out_specs=pl.BlockSpec((batch_tile, Dp), lambda i: (i, 0)),
        ),
        compiler_params=pltpu.CompilerParams(
            dimension_semantics=("parallel",)
        ),
    )(x, mean2d, scale2d)

    return out[:B, :D]


# ---------------------------------------------------------------------------
# TensorTargetTransform equivalent
# ---------------------------------------------------------------------------
class TensorTargetTransform:
    """JAX/Pallas port.  forward: normalize target; inverse: un-normalize.

    For tiny batches (< pallas_min_rows) the normalization is done in fused
    XLA (jnp) — a pallas_call's launch/DMA overhead dwarfs the ~KB of compute.
    """

    def __init__(self, mean, norm, scale: float = 1.0, pallas_min_rows: int = 64):
        self.mean = jnp.asarray(mean, jnp.float32)
        self.norm = jnp.asarray(norm, jnp.float32)
        self.scale = float(scale)
        # Hoisted out of the kernel: scaled norm and its exact reciprocal.
        self.norm_scaled = self.norm * self.scale
        self.inv_norm_scaled = 1.0 / self.norm_scaled
        self.pallas_min_rows = pallas_min_rows

    # TODO(synk): the PyTorch module mutates struct.y[target_name] on a Crystal
    # object and lazily loads a dataset-statistics file; here we just take and
    # return the target tensor directly.
    def forward(self, target, use_pallas=None):
        if use_pallas is None:
            use_pallas = target.shape[0] >= self.pallas_min_rows
        if not use_pallas:
            return (target - self.mean[None, :]) * self.inv_norm_scaled[None, :]
        return _run_normalizer(
            _normalize_fwd_kernel, target, self.mean, self.inv_norm_scaled
        )

    def inverse(self, data, use_pallas=None):
        if use_pallas is None:
            use_pallas = data.shape[0] >= self.pallas_min_rows
        if not use_pallas:
            return data * self.norm_scaled[None, :] + self.mean[None, :]
        return _run_normalizer(
            _normalize_inv_kernel, data, self.mean, self.norm_scaled
        )


# ---------------------------------------------------------------------------
if __name__ == "__main__":
    key = jax.random.PRNGKey(0)
    D = IRREPS_DIM                         # 21
    B = 256                                # batch of "elastic tensors"

    k_stats, k_target, k_small = jax.random.split(key, 3)

    # Synthetic "dataset" tensor used to compute deterministic statistics
    # (stand-in for the dataset_statistics file).
    stats_data = jax.random.normal(k_stats, (64, D), dtype=jnp.float32) * 3.0 + 1.5
    mean, norm = compute_statistics(stats_data)

    # Target tensors to normalize (struct.y['elastic_tensor_full'])
    target = jax.random.normal(k_target, (B, D), dtype=jnp.float32) * 2.0 + 0.7

    xform = TensorTargetTransform(mean, norm, scale=1.0)

    # --- Pallas path (forced) -------------------------------------------
    out = jax.block_until_ready(xform.forward(target, use_pallas=True))
    inv = jax.block_until_ready(xform.inverse(out, use_pallas=True))

    # Pure-JAX reference check (module semantics: divide by norm*scale)
    ref_fwd = (target - mean[None, :]) / (norm[None, :] * 1.0)
    ref_inv = ref_fwd * (norm[None, :] * 1.0) + mean[None, :]
    assert jnp.allclose(out, ref_fwd, atol=1e-5, rtol=1e-5)
    assert jnp.allclose(inv, ref_inv, atol=1e-5, rtol=1e-5)
    assert jnp.allclose(inv, target, atol=1e-4, rtol=1e-4)

    # --- tiny-batch auto-dispatch path (fused XLA, no pallas_call) -------
    small = jax.random.normal(k_small, (8, D), dtype=jnp.float32)
    small_out = jax.block_until_ready(xform.forward(small))      # auto -> XLA
    small_ref = (small - mean[None, :]) / (norm[None, :] * 1.0)
    assert jnp.allclose(small_out, small_ref, atol=1e-5, rtol=1e-5)

    print("KERNEL_OK")
</pallas_src>

<mosaic_0001>
module attributes {stable_mosaic.version = 11 : i64} {
  func.func @_normalize_fwd_kernel(%arg0: i32, %arg1: memref<256x128xf32, #tpu.memory_space<vmem>>, %arg2: memref<1x128xf32, #tpu.memory_space<vmem>>, %arg3: memref<1x128xf32, #tpu.memory_space<vmem>>, %arg4: memref<256x128xf32, #tpu.memory_space<vmem>>) attributes {dimension_semantics = [#tpu.dimension_semantics<parallel>], iteration_bounds = array<i64: 1>, scalar_prefetch = 0 : i64, scratch_operands = 0 : i64, tpu.core_type = #tpu.core_type<tc>, window_params = [{transform_indices = @transform_0, window_bounds = array<i64: 256, 128>}, {pipeline_mode = #tpu.pipeline_mode<synchronous>, transform_indices = @transform_1, window_bounds = array<i64: 1, 128>}, {pipeline_mode = #tpu.pipeline_mode<synchronous>, transform_indices = @transform_2, window_bounds = array<i64: 1, 128>}, {transform_indices = @transform_3, window_bounds = array<i64: 256, 128>}]} {
    %c0 = arith.constant 0 : index
    %c0_0 = arith.constant 0 : index
    %0 = vector.load %arg1[%c0, %c0_0] : memref<256x128xf32, #tpu.memory_space<vmem>>, vector<256x128xf32>
    %c0_1 = arith.constant 0 : index
    %c0_2 = arith.constant 0 : index
    %1 = vector.load %arg2[%c0_1, %c0_2] : memref<1x128xf32, #tpu.memory_space<vmem>>, vector<1x128xf32>
    %2 = vector.broadcast %1 : vector<1x128xf32> to vector<256x128xf32>
    %3 = arith.subf %0, %2 : vector<256x128xf32>
    %c0_3 = arith.constant 0 : index
    %c0_4 = arith.constant 0 : index
    %4 = vector.load %arg3[%c0_3, %c0_4] : memref<1x128xf32, #tpu.memory_space<vmem>>, vector<1x128xf32>
    %5 = vector.broadcast %4 : vector<1x128xf32> to vector<256x128xf32>
    %6 = arith.mulf %3, %5 : vector<256x128xf32>
    %c0_5 = arith.constant 0 : index
    %c0_6 = arith.constant 0 : index
    %7 = vector.load %arg4[%c0_5, %c0_6] : memref<256x128xf32, #tpu.memory_space<vmem>>, vector<256x128xf32>
    tpu.vector_store %arg4[%c0_5, %c0_6], %6 {strides = array<i32>} : memref<256x128xf32, #tpu.memory_space<vmem>>, vector<256x128xf32>,
    return
  }
  func.func @transform_0(%arg0: i32) -> (i32, i32) {
    %c0_i32 = arith.constant 0 : i32
    %c0_i32_0 = arith.constant 0 : i32
    return %arg0, %c0_i32 : i32, i32
  }
  func.func @transform_1(%arg0: i32) -> (i32, i32) {
    %c0_i32 = arith.constant 0 : i32
    %c0_i32_0 = arith.constant 0 : i32
    %c0_i32_1 = arith.constant 0 : i32
    return %c0_i32, %c0_i32_0 : i32, i32
  }
  func.func @transform_2(%arg0: i32) -> (i32, i32) {
    %c0_i32 = arith.constant 0 : i32
    %c0_i32_0 = arith.constant 0 : i32
    %c0_i32_1 = arith.constant 0 : i32
    return %c0_i32, %c0_i32_0 : i32, i32
  }
  func.func @transform_3(%arg0: i32) -> (i32, i32) {
    %c0_i32 = arith.constant 0 : i32
    %c0_i32_0 = arith.constant 0 : i32
    return %arg0, %c0_i32 : i32, i32
  }
}

</mosaic_0001>

<llo_original>
// kernel: tpu_custom_call.1
$region0: #{tpu_custom_call.1}
  #allocation0 [shape = 'u32[]', space=smem, size = 0x4, offset = 0x4, fixed_abs, tag = 'smem constant byte address 0x4 - core index']
  #allocation1 [shape = 'u32[144,128]{1,0:T(1,128)}', space=vmem, size = 0x12000, scoped, tag = 'internal scratch']
  %s0 = inlined_call_operand.hbm [shape: f32[256,128], index: 0, kind: input, shape index: {}]
  %s1 = inlined_call_operand.vmem [shape: f32[1,128], index: 1, kind: input, shape index: {}]
  %s2 = inlined_call_operand.vmem [shape: f32[1,128], index: 2, kind: input, shape index: {}]
  %s3 = inlined_call_operand.hbm [shape: f32[256,128], index: 3, kind: output, shape index: {}]
  %s4 = sld [smem:[#allocation0]]
  $region26: #{tpu_custom_call.1} parent=0
    _
  %s6 = ssub.s32 1, %s4
  %s7 = scalar_select 0, %s6, %s4
  $region1: #{tpu_custom_call.1} parent=0
    #allocation2 [shape = 'u8[131072]{0}', space=vmem, size = 0x20000, scoped, tag = 'input window, operand 0, single buffered']
    #allocation3 [shape = 's32[1]{0}', space=sflag, size = 0x4, scoped, tag = 'scoped memory for tpu_custom_call.1']
    #allocation4 [shape = 's32[1]{0}', space=sflag, size = 0x4, scoped, tag = 'scoped memory for tpu_custom_call.1']
    #allocation5 [shape = 'u8[131072]{0}', space=vmem, size = 0x20000, scoped, tag = 'output window, operand 0, single buffered']
    %8 = vsyncpa [#allocation3], 0
    %9 = vsyncpa [#allocation4], 0
    // Predicated region
    $region2: #{tpu_custom_call.1} parent=1 // pred_check
      _
    $region3: #{tpu_custom_call.1} parent=1 // pred_check_branch
      %11 = sbr.rel (0) target = $region5
    $region4: #{tpu_custom_call.1} parent=1 // pred_region
      %s13 = ssub.s32 4096, 4096
      %14 = vsyncadd [#allocation3], %s13
      %s15 = sshll.u32 [#allocation2], 4
      %s16 = int_to_ptr.vmem [resolvable:$true] %s15
      %21 = dma.hbm_to_vmem [thread:$0]  %s0, 4096, %s16, [#allocation3], 128, 128, 8
    $region5: #{tpu_custom_call.1} parent=1 // pred_fallthru
      _
    // Predicated region
    $region6: #{tpu_custom_call.1} parent=1 // pred_check
      _
    $region7: #{tpu_custom_call.1} parent=1 // pred_check_branch
      %23 = sbr.rel (0) target = $region9
    $region8: #{tpu_custom_call.1} parent=1 // pred_region
      _
    $region9: #{tpu_custom_call.1} parent=1 // pred_fallthru
      _
    // Predicated region
    $region10: #{tpu_custom_call.1} parent=1 // pred_check
      _
    $region11: #{tpu_custom_call.1} parent=1 // pred_check_branch
      %25 = sbr.rel (0) target = $region13
    $region12: #{tpu_custom_call.1} parent=1 // pred_region
      _
    $region13: #{tpu_custom_call.1} parent=1 // pred_fallthru
      _
    // Predicated region
    $region14: #{tpu_custom_call.1} parent=1 // pred_check
      _
    $region15: #{tpu_custom_call.1} parent=1 // pred_check_branch
      %27 = sbr.rel (0) target = $region17
    $region16: #{tpu_custom_call.1} parent=1 // pred_region
      %28 = dma.done [#allocation3], 4096
    $region17: #{tpu_custom_call.1} parent=1 // pred_fallthru
      _
    %v29 = vld [vmem:[#allocation2] sm:$0xff]
    %v30 = vld [vmem:[#allocation2 + $0x8] sm:$0xff]
    %v31 = vld [vmem:[#allocation2 + $0x10] sm:$0xff]
    %v32 = vld [vmem:[#allocation2 + $0x18] sm:$0xff]
    %v33 = vld [vmem:[#allocation2 + $0x20] sm:$0xff]
    %v34 = vld [vmem:[#allocation2 + $0x28] sm:$0xff]
    %v35 = vld [vmem:[#allocation2 + $0x30] sm:$0xff]
    %v36 = vld [vmem:[#allocation2 + $0x38] sm:$0xff]
    %v37 = vld [vmem:[#allocation2 + $0x40] sm:$0xff]
    %v38 = vld [vmem:[#allocation2 + $0x48] sm:$0xff]
    %v39 = vld [vmem:[#allocation2 + $0x50] sm:$0xff]
    %v40 = vld [vmem:[#allocation2 + $0x58] sm:$0xff]
    %v41 = vld [vmem:[#allocation2 + $0x60] sm:$0xff]
    %v42 = vld [vmem:[#allocation2 + $0x68] sm:$0xff]
    %v43 = vld [vmem:[#allocation2 + $0x70] sm:$0xff]
    %v44 = vld [vmem:[#allocation2 + $0x78] sm:$0xff]
    %v45 = vld [vmem:[#allocation2 + $0x80] sm:$0xff]
    %v46 = vld [vmem:[#allocation2 + $0x88] sm:$0xff]
    %v47 = vld [vmem:[#allocation2 + $0x90] sm:$0xff]
    %v48 = vld [vmem:[#allocation2 + $0x98] sm:$0xff]
    %v49 = vld [vmem:[#allocation2 + $0xa0] sm:$0xff]
    %v50 = vld [vmem:[#allocation2 + $0xa8] sm:$0xff]
    %v51 = vld [vmem:[#allocation2 + $0xb0] sm:$0xff]
    %v52 = vld [vmem:[#allocation2 + $0xb8] sm:$0xff]
    %v53 = vld [vmem:[#allocation2 + $0xc0] sm:$0xff]
    %v54 = vld [vmem:[#allocation2 + $0xc8] sm:$0xff]
    %v55 = vld [vmem:[#allocation2 + $0xd0] sm:$0xff]
    %v56 = vld [vmem:[#allocation2 + $0xd8] sm:$0xff]
    %v57 = vld [vmem:[#allocation2 + $0xe0] sm:$0xff]
    %v58 = vld [vmem:[#allocation2 + $0xe8] sm:$0xff]
    %v59 = vld [vmem:[#allocation2 + $0xf0] sm:$0xff]
    %v60 = vld [vmem:[#allocation2 + $0xf8] sm:$0xff]
    %v61 = vld [vmem:[%s1] sm:$0x1]
    %v63 = vlaneseq
    %v64 = vshrl.u32 %v63, 7
    %v65 = vsub.s32 0, %v64
    %v66 = vrot.slane %v61, %v65
    %v68 = vsub.f32 %v29, %v66
    %v69 = vsub.f32 %v30, %v66
    %v70 = vsub.f32 %v31, %v66
    %v71 = vsub.f32 %v32, %v66
    %v72 = vsub.f32 %v33, %v66
    %v73 = vsub.f32 %v34, %v66
    %v74 = vsub.f32 %v35, %v66
    %v75 = vsub.f32 %v36, %v66
    %v76 = vsub.f32 %v37, %v66
    %v77 = vsub.f32 %v38, %v66
    %v78 = vsub.f32 %v39, %v66
    %v79 = vsub.f32 %v40, %v66
    %v80 = vsub.f32 %v41, %v66
    %v81 = vsub.f32 %v42, %v66
    %v82 = vsub.f32 %v43, %v66
    %v83 = vsub.f32 %v44, %v66
    %v84 = vsub.f32 %v45, %v66
    %v85 = vsub.f32 %v46, %v66
    %v86 = vsub.f32 %v47, %v66
    %v87 = vsub.f32 %v48, %v66
    %v88 = vsub.f32 %v49, %v66
    %v89 = vsub.f32 %v50, %v66
    %v90 = vsub.f32 %v51, %v66
    %v91 = vsub.f32 %v52, %v66
    %v92 = vsub.f32 %v53, %v66
    %v93 = vsub.f32 %v54, %v66
    %v94 = vsub.f32 %v55, %v66
    %v95 = vsub.f32 %v56, %v66
    %v96 = vsub.f32 %v57, %v66
    %v97 = vsub.f32 %v58, %v66
    %v98 = vsub.f32 %v59, %v66
    %v99 = vsub.f32 %v60, %v66
    %v100 = vld [vmem:[%s2] sm:$0x1]
    %v102 = vlaneseq
    %v103 = vshrl.u32 %v102, 7
    %v104 = vsub.s32 0, %v103
    %v105 = vrot.slane %v100, %v104
    %v107 = vmul.f32 %v68, %v105
    %v108 = vmul.f32 %v69, %v105
    %v109 = vmul.f32 %v70, %v105
    %v110 = vmul.f32 %v71, %v105
    %v111 = vmul.f32 %v72, %v105
    %v112 = vmul.f32 %v73, %v105
    %v113 = vmul.f32 %v74, %v105
    %v114 = vmul.f32 %v75, %v105
    %v115 = vmul.f32 %v76, %v105
    %v116 = vmul.f32 %v77, %v105
    %v117 = vmul.f32 %v78, %v105
    %v118 = vmul.f32 %v79, %v105
    %v119 = vmul.f32 %v80, %v105
    %v120 = vmul.f32 %v81, %v105
    %v121 = vmul.f32 %v82, %v105
    %v122 = vmul.f32 %v83, %v105
    %v123 = vmul.f32 %v84, %v105
    %v124 = vmul.f32 %v85, %v105
    %v125 = vmul.f32 %v86, %v105
    %v126 = vmul.f32 %v87, %v105
    %v127 = vmul.f32 %v88, %v105
    %v128 = vmul.f32 %v89, %v105
    %v129 = vmul.f32 %v90, %v105
    %v130 = vmul.f32 %v91, %v105
    %v131 = vmul.f32 %v92, %v105
    %v132 = vmul.f32 %v93, %v105
    %v133 = vmul.f32 %v94, %v105
    %v134 = vmul.f32 %v95, %v105
    %v135 = vmul.f32 %v96, %v105
    %v136 = vmul.f32 %v97, %v105
    %v137 = vmul.f32 %v98, %v105
    %v138 = vmul.f32 %v99, %v105
    %139 = vst [vmem:[#allocation5] sm:$0xff] %v107
    %140 = vst [vmem:[#allocation5 + $0x8] sm:$0xff] %v108
    %141 = vst [vmem:[#allocation5 + $0x10] sm:$0xff] %v109
    %142 = vst [vmem:[#allocation5 + $0x18] sm:$0xff] %v110
    %143 = vst [vmem:[#allocation5 + $0x20] sm:$0xff] %v111
    %144 = vst [vmem:[#allocation5 + $0x28] sm:$0xff] %v112
    %145 = vst [vmem:[#allocation5 + $0x30] sm:$0xff] %v113
    %146 = vst [vmem:[#allocation5 + $0x38] sm:$0xff] %v114
    %147 = vst [vmem:[#allocation5 + $0x40] sm:$0xff] %v115
    %148 = vst [vmem:[#allocation5 + $0x48] sm:$0xff] %v116
    %149 = vst [vmem:[#allocation5 + $0x50] sm:$0xff] %v117
    %150 = vst [vmem:[#allocation5 + $0x58] sm:$0xff] %v118
    %151 = vst [vmem:[#allocation5 + $0x60] sm:$0xff] %v119
    %152 = vst [vmem:[#allocation5 + $0x68] sm:$0xff] %v120
    %153 = vst [vmem:[#allocation5 + $0x70] sm:$0xff] %v121
    %154 = vst [vmem:[#allocation5 + $0x78] sm:$0xff] %v122
    %155 = vst [vmem:[#allocation5 + $0x80] sm:$0xff] %v123
    %156 = vst [vmem:[#allocation5 + $0x88] sm:$0xff] %v124
    %157 = vst [vmem:[#allocation5 + $0x90] sm:$0xff] %v125
    %158 = vst [vmem:[#allocation5 + $0x98] sm:$0xff] %v126
    %159 = vst [vmem:[#allocation5 + $0xa0] sm:$0xff] %v127
    %160 = vst [vmem:[#allocation5 + $0xa8] sm:$0xff] %v128
    %161 = vst [vmem:[#allocation5 + $0xb0] sm:$0xff] %v129
    %162 = vst [vmem:[#allocation5 + $0xb8] sm:$0xff] %v130
    %163 = vst [vmem:[#allocation5 + $0xc0] sm:$0xff] %v131
    %164 = vst [vmem:[#allocation5 + $0xc8] sm:$0xff] %v132
    %165 = vst [vmem:[#allocation5 + $0xd0] sm:$0xff] %v133
    %166 = vst [vmem:[#allocation5 + $0xd8] sm:$0xff] %v134
    %167 = vst [vmem:[#allocation5 + $0xe0] sm:$0xff] %v135
    %168 = vst [vmem:[#allocation5 + $0xe8] sm:$0xff] %v136
    %169 = vst [vmem:[#allocation5 + $0xf0] sm:$0xff] %v137
    %170 = vst [vmem:[#allocation5 + $0xf8] sm:$0xff] %v138
    // Predicated region
    $region18: #{tpu_custom_call.1} parent=1 // pred_check
      _
    $region19: #{tpu_custom_call.1} parent=1 // pred_check_branch
      %172 = sbr.rel (0) target = $region21
    $region20: #{tpu_custom_call.1} parent=1 // pred_region
      %s174 = ssub.s32 4096, 4096
      %175 = vsyncadd [#allocation4], %s174
      %s176 = sshll.u32 [#allocation5], 4
      %s177 = int_to_ptr.vmem [resolvable:$true] %s176
      %182 = dma.vmem_to_hbm [thread:$0]  %s177, 4096, %s3, [#allocation4], 128, 128, 8
    $region21: #{tpu_custom_call.1} parent=1 // pred_fallthru
      _
    // Predicated region
    $region22: #{tpu_custom_call.1} parent=1 // pred_check
      _
    $region23: #{tpu_custom_call.1} parent=1 // pred_check_branch
      %184 = sbr.rel (0) target = $region25
    $region24: #{tpu_custom_call.1} parent=1 // pred_region
      %185 = dma.done [#allocation4], 4096
    $region25: #{tpu_custom_call.1} parent=1 // pred_fallthru
      _
    %186 = vsyncpa [#allocation3], 1
    %187 = vsyncpa [#allocation4], 1

</llo_original>
